<compile_context>
chip_gen: v7x
topology: tpu7x:2x2x1
jax: 0.10.0
libtpu: 0.0.40
codegen_flags: <defaults>
</compile_context>

<pallas_src>
import jax
import jax.numpy as jnp
from jax import lax
from jax.experimental import pallas as pl
from jax.experimental.pallas import tpu as pltpu

# ------------------------- model dimensions ---------------------------------
B = 2            # batch
SEQ = 8          # sequence length of each hidden state
INPUT_DIM = 32   # hidden size per layer
NUM_LAYERS = 4   # number of transformer layers whose CLS tokens we stack
D0 = INPUT_DIM * NUM_LAYERS   # 128, dim after flatten
D1 = 64
D2 = 16
D3 = 4
LN_EPS = 1e-5

# -------------------- packed parameter slab layout (rows) --------------------
W1_ROW = 0                      # rows   0:128 , cols 0:64  -> w1  (128, 64)
W2_ROW = D0                     # rows 128:192 , cols 0:16  -> w2f (64, 16)
W3_ROW = D0 + D1                # rows 192:208 , cols 0:4   -> w3  (16, 4)
BIAS_ROW = D0 + D1 + D2         # rows 208:211              -> b1 / b2f / b3
SLAB_ROWS = 216                 # padded to a multiple of 8 sublanes


# ------------------------------ kernel ---------------------------------------
def head_kernel(x_ref, p_ref, o_ref):
    """Fused head: Linear -> Tanh -> LayerNorm(affine folded) -> Linear -> ReLU
    -> Linear, all f32.

    x_ref : (B, 128) f32  — concatenated CLS tokens (lane-dense)
    p_ref : (216, 128) f32 — packed parameter slab (weights + biases)
    o_ref : (B, 4) f32    — logits
    """
    x = x_ref[...]                                               # (B, 128)

    # Bias rows loaded once as a full-lane (3, 128) tile, sliced in-register.
    bias = p_ref[BIAS_ROW:BIAS_ROW + 3, :]                       # (3, 128)

    # ---- Linear1: single K=128 MXU dot.
    w1 = p_ref[W1_ROW:W1_ROW + D0, 0:D1]                         # (128, 64)
    h = jnp.dot(x, w1, preferred_element_type=jnp.float32)       # (B, 64)
    h = h + bias[0:1, 0:D1]

    # ---- Tanh (EUP)
    h = jnp.tanh(h)

    # ---- LayerNorm (affine folded into Linear2 offline)
    mean = jnp.mean(h, axis=-1, keepdims=True)
    var = jnp.mean((h - mean) * (h - mean), axis=-1, keepdims=True)
    h = (h - mean) * lax.rsqrt(var + LN_EPS)

    # Dropout: identity at eval time.

    # ---- Linear2 (LN affine pre-folded) + ReLU
    w2 = p_ref[W2_ROW:W2_ROW + D1, 0:D2]                         # (64, 16)
    h = jnp.dot(h, w2, preferred_element_type=jnp.float32)       # (B, 16)
    h = h + bias[1:2, 0:D2]
    h = jnp.maximum(h, 0.0)

    # ---- Linear3 (logits)
    w3 = p_ref[W3_ROW:W3_ROW + D2, 0:D3]                         # (16, 4)
    h = jnp.dot(h, w3, preferred_element_type=jnp.float32)       # (B, 4)
    h = h + bias[2:3, 0:D3]

    o_ref[...] = h.astype(o_ref.dtype)


# ------------------------------ wrapper ---------------------------------------
def dynamic_classification_head(hidden_states, param_slab):
    """use_all_layers=True forward path: CLS gather/concat in XLA (tiny, lane-
    dense), the whole MLP head in one 2-operand pallas_call."""
    assert len(hidden_states) == NUM_LAYERS
    bsz = hidden_states[0].shape[0]

    # CLS rows only -> single (B, 128) f32 activation entering the kernel.
    cls = jnp.concatenate([hs[:, 0, :] for hs in hidden_states], axis=-1)

    cost = pl.CostEstimate(
        flops=2 * bsz * (D0 * D1 + D1 * D2 + D2 * D3),
        transcendentals=bsz * (D1 + 1),                  # tanh + rsqrt
        bytes_accessed=(cls.size + param_slab.size + bsz * D3) * 4,
    )

    out = pl.pallas_call(
        head_kernel,
        out_shape=jax.ShapeDtypeStruct((bsz, D3), jnp.float32),
        in_specs=[pl.BlockSpec(memory_space=pltpu.MemorySpace.VMEM)] * 2,
        out_specs=pl.BlockSpec(memory_space=pltpu.MemorySpace.VMEM),
        cost_estimate=cost,
    )(cls, param_slab)
    return out


# ------------------------ deterministic parameter init ------------------------
def init_params(key):
    """Raw f32 params mirroring the PyTorch module (Linear stored as (in, out))."""
    ks = jax.random.split(key, 6)
    scale = 0.05
    return {
        'w1': jax.random.normal(ks[0], (D0, D1), jnp.float32) * scale,
        'b1': jax.random.normal(ks[1], (1, D1), jnp.float32) * scale,
        'ln_g': jnp.ones((1, D1), jnp.float32),   # nn.LayerNorm default weight
        'ln_b': jnp.zeros((1, D1), jnp.float32),  # nn.LayerNorm default bias
        'w2': jax.random.normal(ks[2], (D1, D2), jnp.float32) * scale,
        'b2': jax.random.normal(ks[3], (1, D2), jnp.float32) * scale,
        'w3': jax.random.normal(ks[4], (D2, D3), jnp.float32) * scale,
        'b3': jax.random.normal(ks[5], (1, D3), jnp.float32) * scale,
    }


def prepare_kernel_params(p):
    """Offline: fold LN affine into Linear2 and pack every parameter into one
    pre-padded (216, 128) f32 slab (single DMA into the kernel)."""
    # Fold:  (x_n * g + b) @ W2 + b2  ==  x_n @ (g^T * W2) + (b @ W2 + b2)
    w2f = p['ln_g'].reshape(D1, 1) * p['w2']             # (D1, D2) f32
    b2f = p['ln_b'] @ p['w2'] + p['b2']                  # (1, D2)  f32

    slab = jnp.zeros((SLAB_ROWS, 128), jnp.float32)
    slab = slab.at[W1_ROW:W1_ROW + D0, :D1].set(p['w1'])
    slab = slab.at[W2_ROW:W2_ROW + D1, :D2].set(w2f)
    slab = slab.at[W3_ROW:W3_ROW + D2, :D3].set(p['w3'])
    slab = slab.at[BIAS_ROW + 0, :D1].set(p['b1'].reshape(-1))
    slab = slab.at[BIAS_ROW + 1, :D2].set(b2f.reshape(-1))
    slab = slab.at[BIAS_ROW + 2, :D3].set(p['b3'].reshape(-1))
    return slab


# --------------------------- pure-JAX reference --------------------------------
def reference_forward(hidden_states, p):
    """Unfused f32 reference with the original module semantics."""
    cls = jnp.stack([hs[:, 0, :] for hs in hidden_states], axis=1)   # (B, L, D)
    x = cls[:, None, :, :].reshape(cls.shape[0], -1)                 # (B, L*D)
    h = x @ p['w1'] + p['b1']
    h = jnp.tanh(h)
    mean = jnp.mean(h, axis=-1, keepdims=True)
    var = jnp.mean((h - mean) ** 2, axis=-1, keepdims=True)
    h = (h - mean) / jnp.sqrt(var + LN_EPS)
    h = h * p['ln_g'] + p['ln_b']
    h = h @ p['w2'] + p['b2']
    h = jnp.maximum(h, 0.0)
    h = h @ p['w3'] + p['b3']
    return h


if __name__ == "__main__":
    key = jax.random.PRNGKey(0)
    pkey, hkey = jax.random.split(key)
    raw_params = init_params(pkey)
    param_slab = prepare_kernel_params(raw_params)

    # Synthetic hidden_states: NUM_LAYERS tensors of shape (B, SEQ, INPUT_DIM).
    hkeys = jax.random.split(hkey, NUM_LAYERS)
    hidden_states = [
        jax.random.normal(hkeys[i], (B, SEQ, INPUT_DIM), jnp.float32)
        for i in range(NUM_LAYERS)
    ]

    out = dynamic_classification_head(hidden_states, param_slab)
    out = jax.block_until_ready(out)

    ref = reference_forward(hidden_states, raw_params)
    assert out.shape == (B, D3), out.shape
    # All-f32 path -> tight tolerance.
    assert jnp.allclose(out, ref, atol=1e-4, rtol=1e-4), (
        f"max abs err = {jnp.max(jnp.abs(out - ref))}")

    print("KERNEL_OK")
</pallas_src>

<mosaic_0001>
module attributes {stable_mosaic.version = 11 : i64} {
  func.func @head_kernel(%arg0: memref<2x128xf32, #tpu.memory_space<vmem>>, %arg1: memref<216x128xf32, #tpu.memory_space<vmem>>, %arg2: memref<2x4xf32, #tpu.memory_space<vmem>>) attributes {dimension_semantics = [], scalar_prefetch = 0 : i64, scratch_operands = 0 : i64, tpu.core_type = #tpu.core_type<tc>} {
    %c0 = arith.constant 0 : index
    %c0_0 = arith.constant 0 : index
    %0 = vector.load %arg0[%c0, %c0_0] : memref<2x128xf32, #tpu.memory_space<vmem>>, vector<2x128xf32>
    %c208 = arith.constant 208 : index
    %c0_1 = arith.constant 0 : index
    %1 = vector.load %arg1[%c208, %c0_1] : memref<216x128xf32, #tpu.memory_space<vmem>>, vector<3x128xf32>
    %c0_2 = arith.constant 0 : index
    %c0_3 = arith.constant 0 : index
    %2 = vector.load %arg1[%c0_2, %c0_3] : memref<216x128xf32, #tpu.memory_space<vmem>>, vector<128x64xf32>
    %cst = arith.constant dense<0.000000e+00> : vector<2x64xf32>
    %3 = tpu.matmul %0, %2, %cst {dimension_numbers = #tpu.dot_dimension_numbers<[1], [0], [0], [1], [0, 0, 1, 1], [], []>} : vector<2x128xf32>, vector<128x64xf32>, vector<2x64xf32> -> vector<2x64xf32>
    %4 = vector.extract_strided_slice %1 {offsets = [0, 0], sizes = [1, 64], strides = [1, 1]} : vector<3x128xf32> to vector<1x64xf32>
    %5 = vector.broadcast %4 : vector<1x64xf32> to vector<2x64xf32>
    %6 = arith.addf %3, %5 : vector<2x64xf32>
    %7 = math.tanh %6 : vector<2x64xf32>
    %cst_4 = arith.constant dense<0.000000e+00> : vector<2xf32>
    %8 = vector.multi_reduction <add>, %7, %cst_4 [1] : vector<2x64xf32> to vector<2xf32>
    %9 = vector.shape_cast %8 : vector<2xf32> to vector<2x1xf32>
    %cst_5 = arith.constant 6.400000e+01 : f32
    %10 = vector.broadcast %cst_5 : f32 to vector<2x1xf32>
    %11 = arith.divf %9, %10 : vector<2x1xf32>
    %12 = vector.broadcast %11 : vector<2x1xf32> to vector<2x64xf32>
    %13 = arith.subf %7, %12 : vector<2x64xf32>
    %14 = vector.broadcast %11 : vector<2x1xf32> to vector<2x64xf32>
    %15 = arith.subf %7, %14 : vector<2x64xf32>
    %16 = arith.mulf %13, %15 : vector<2x64xf32>
    %cst_6 = arith.constant dense<0.000000e+00> : vector<2xf32>
    %17 = vector.multi_reduction <add>, %16, %cst_6 [1] : vector<2x64xf32> to vector<2xf32>
    %18 = vector.shape_cast %17 : vector<2xf32> to vector<2x1xf32>
    %cst_7 = arith.constant 6.400000e+01 : f32
    %19 = vector.broadcast %cst_7 : f32 to vector<2x1xf32>
    %20 = arith.divf %18, %19 : vector<2x1xf32>
    %21 = vector.broadcast %11 : vector<2x1xf32> to vector<2x64xf32>
    %22 = arith.subf %7, %21 : vector<2x64xf32>
    %cst_8 = arith.constant 9.99999974E-6 : f32
    %23 = vector.broadcast %cst_8 : f32 to vector<2x1xf32>
    %24 = arith.addf %20, %23 : vector<2x1xf32>
    %25 = math.rsqrt %24 : vector<2x1xf32>
    %26 = vector.broadcast %25 : vector<2x1xf32> to vector<2x64xf32>
    %27 = arith.mulf %22, %26 : vector<2x64xf32>
    %c128 = arith.constant 128 : index
    %c0_9 = arith.constant 0 : index
    %28 = vector.load %arg1[%c128, %c0_9] : memref<216x128xf32, #tpu.memory_space<vmem>>, vector<64x16xf32>
    %cst_10 = arith.constant dense<0.000000e+00> : vector<2x16xf32>
    %29 = tpu.matmul %27, %28, %cst_10 {dimension_numbers = #tpu.dot_dimension_numbers<[1], [0], [0], [1], [0, 0, 1, 1], [], []>} : vector<2x64xf32>, vector<64x16xf32>, vector<2x16xf32> -> vector<2x16xf32>
    %30 = vector.extract_strided_slice %1 {offsets = [1, 0], sizes = [1, 16], strides = [1, 1]} : vector<3x128xf32> to vector<1x16xf32>
    %31 = vector.broadcast %30 : vector<1x16xf32> to vector<2x16xf32>
    %32 = arith.addf %29, %31 : vector<2x16xf32>
    %cst_11 = arith.constant 0.000000e+00 : f32
    %33 = vector.broadcast %cst_11 : f32 to vector<2x16xf32>
    %34 = arith.maximumf %32, %33 : vector<2x16xf32>
    %c192 = arith.constant 192 : index
    %c0_12 = arith.constant 0 : index
    %35 = vector.load %arg1[%c192, %c0_12] : memref<216x128xf32, #tpu.memory_space<vmem>>, vector<16x4xf32>
    %cst_13 = arith.constant dense<0.000000e+00> : vector<2x4xf32>
    %36 = tpu.matmul %34, %35, %cst_13 {dimension_numbers = #tpu.dot_dimension_numbers<[1], [0], [0], [1], [0, 0, 1, 1], [], []>} : vector<2x16xf32>, vector<16x4xf32>, vector<2x4xf32> -> vector<2x4xf32>
    %37 = vector.extract_strided_slice %1 {offsets = [2, 0], sizes = [1, 4], strides = [1, 1]} : vector<3x128xf32> to vector<1x4xf32>
    %38 = vector.broadcast %37 : vector<1x4xf32> to vector<2x4xf32>
    %39 = arith.addf %36, %38 : vector<2x4xf32>
    %c0_14 = arith.constant 0 : index
    %c0_15 = arith.constant 0 : index
    %40 = vector.load %arg2[%c0_14, %c0_15] : memref<2x4xf32, #tpu.memory_space<vmem>>, vector<2x4xf32>
    tpu.vector_store %arg2[%c0_14, %c0_15], %39 {strides = array<i32>} : memref<2x4xf32, #tpu.memory_space<vmem>>, vector<2x4xf32>,
    return
  }
}

</mosaic_0001>

<llo_original>
// kernel: tpu_custom_call.1
$region0: #{tpu_custom_call.1}
  #allocation0 [shape = 'u32[]', space=smem, size = 0x4, offset = 0x4, fixed_abs, tag = 'smem constant byte address 0x4 - core index']
  #allocation1 [shape = 'u32[144,128]{1,0:T(1,128)}', space=vmem, size = 0x12000, scoped, tag = 'internal scratch']
  %s0 = inlined_call_operand.hbm [shape: f32[2,128], index: 0, kind: input, shape index: {}]
  %s1 = inlined_call_operand.hbm [shape: f32[216,128], index: 1, kind: input, shape index: {}]
  %s2 = inlined_call_operand.hbm [shape: f32[2,4], index: 2, kind: output, shape index: {}]
  %s3 = sld [smem:[#allocation0]]
  $region26: #{tpu_custom_call.1} parent=0
    _
  %s5 = ssub.s32 1, %s3
  %s6 = scalar_select 0, %s5, %s3
  $region1: #{tpu_custom_call.1} parent=0
    #allocation2 [shape = 'u8[1024]{0}', space=vmem, size = 0x400, scoped, tag = 'input window, operand 0, single buffered']
    #allocation3 [shape = 's32[1]{0}', space=sflag, size = 0x4, scoped, tag = 'scoped memory for tpu_custom_call.1']
    #allocation4 [shape = 's32[1]{0}', space=sflag, size = 0x4, scoped, tag = 'scoped memory for tpu_custom_call.1']
    #allocation5 [shape = 'u8[110592]{0}', space=vmem, size = 0x1b000, scoped, tag = 'input window, operand 1, single buffered']
    #allocation6 [shape = 's32[1]{0}', space=sflag, size = 0x4, scoped, tag = 'scoped memory for tpu_custom_call.1']
    #allocation7 [shape = 'u8[1024]{0}', space=vmem, size = 0x400, scoped, tag = 'output window, operand 0, single buffered']
    %7 = vsyncpa [#allocation3], 0
    %8 = vsyncpa [#allocation6], 0
    %9 = vsyncpa [#allocation4], 0
    // Predicated region
    $region2: #{tpu_custom_call.1} parent=1 // pred_check
      _
    $region3: #{tpu_custom_call.1} parent=1 // pred_check_branch
      %11 = sbr.rel (0) target = $region5
    $region4: #{tpu_custom_call.1} parent=1 // pred_region
      %s13 = ssub.s32 32, 32
      %14 = vsyncadd [#allocation3], %s13
      %s16 = sshll.u32 [#allocation2], 4
      %s17 = int_to_ptr.vmem [resolvable:$true] %s16
      %19 = dma.hbm_to_vmem [thread:$0]  %s0, 32, %s17, [#allocation3]
    $region5: #{tpu_custom_call.1} parent=1 // pred_fallthru
      _
    // Predicated region
    $region6: #{tpu_custom_call.1} parent=1 // pred_check
      _
    $region7: #{tpu_custom_call.1} parent=1 // pred_check_branch
      %21 = sbr.rel (0) target = $region9
    $region8: #{tpu_custom_call.1} parent=1 // pred_region
      %s23 = ssub.s32 3456, 3456
      %24 = vsyncadd [#allocation6], %s23
      %s25 = sshll.u32 [#allocation5], 4
      %s26 = int_to_ptr.vmem [resolvable:$true] %s25
      %31 = dma.hbm_to_vmem [thread:$0]  %s1, 3456, %s26, [#allocation6], 128, 128, 8
    $region9: #{tpu_custom_call.1} parent=1 // pred_fallthru
      _
    // Predicated region
    $region10: #{tpu_custom_call.1} parent=1 // pred_check
      _
    $region11: #{tpu_custom_call.1} parent=1 // pred_check_branch
      %33 = sbr.rel (0) target = $region13
    $region12: #{tpu_custom_call.1} parent=1 // pred_region
      %34 = dma.done [#allocation3], 32
    $region13: #{tpu_custom_call.1} parent=1 // pred_fallthru
      _
    // Predicated region
    $region14: #{tpu_custom_call.1} parent=1 // pred_check
      _
    $region15: #{tpu_custom_call.1} parent=1 // pred_check_branch
      %36 = sbr.rel (0) target = $region17
    $region16: #{tpu_custom_call.1} parent=1 // pred_region
      %37 = dma.done [#allocation6], 3456
    $region17: #{tpu_custom_call.1} parent=1 // pred_fallthru
      _
    %v38 = vld [vmem:[#allocation2] sm:$0x3]
    %v39 = vld [vmem:[#allocation5 + $0xd0] sm:$0x7]
    %v40 = vld [vmem:[#allocation5] sm:$0xff]
    %v41 = vld [vmem:[#allocation5 + $0x8] sm:$0xff]
    %v42 = vld [vmem:[#allocation5 + $0x10] sm:$0xff]
    %v43 = vld [vmem:[#allocation5 + $0x18] sm:$0xff]
    %v44 = vld [vmem:[#allocation5 + $0x20] sm:$0xff]
    %v45 = vld [vmem:[#allocation5 + $0x28] sm:$0xff]
    %v46 = vld [vmem:[#allocation5 + $0x30] sm:$0xff]
    %v47 = vld [vmem:[#allocation5 + $0x38] sm:$0xff]
    %v48 = vld [vmem:[#allocation5 + $0x40] sm:$0xff]
    %v49 = vld [vmem:[#allocation5 + $0x48] sm:$0xff]
    %v50 = vld [vmem:[#allocation5 + $0x50] sm:$0xff]
    %v51 = vld [vmem:[#allocation5 + $0x58] sm:$0xff]
    %v52 = vld [vmem:[#allocation5 + $0x60] sm:$0xff]
    %v53 = vld [vmem:[#allocation5 + $0x68] sm:$0xff]
    %v54 = vld [vmem:[#allocation5 + $0x70] sm:$0xff]
    %v55 = vld [vmem:[#allocation5 + $0x78] sm:$0xff]
    %v56 = vlaneseq
    %v57 = vshrl.u32 %v56, 7
    %v58 = vsub.s32 0, %v57
    %v59 = vrot.slane %v39, %v58
    %60 = vmatprep.subr.mxu0 0.0
    %61 = vmatpush1.msra.mxu0 %v40
    %62 = vmatprep.subr.mxu0 0.0
    %63 = vmatpush1.msra.mxu0 %v41
    %64 = vmatprep.subr.mxu0 0.0
    %65 = vmatpush1.msra.mxu0 %v42
    %66 = vmatprep.subr.mxu0 0.0
    %67 = vmatpush1.msra.mxu0 %v43
    %68 = vmatprep.subr.mxu0 0.0
    %69 = vmatpush1.msra.mxu0 %v44
    %70 = vmatprep.subr.mxu0 0.0
    %71 = vmatpush1.msra.mxu0 %v45
    %72 = vmatprep.subr.mxu0 0.0
    %73 = vmatpush1.msra.mxu0 %v46
    %74 = vmatprep.subr.mxu0 0.0
    %75 = vmatpush1.msra.mxu0 %v47
    %76 = vmatprep.subr.mxu0 0.0
    %77 = vmatpush1.msra.mxu0 %v48
    %78 = vmatprep.subr.mxu0 0.0
    %79 = vmatpush1.msra.mxu0 %v49
    %80 = vmatprep.subr.mxu0 0.0
    %81 = vmatpush1.msra.mxu0 %v50
    %82 = vmatprep.subr.mxu0 0.0
    %83 = vmatpush1.msra.mxu0 %v51
    %84 = vmatprep.subr.mxu0 0.0
    %85 = vmatpush1.msra.mxu0 %v52
    %86 = vmatprep.subr.mxu0 0.0
    %87 = vmatpush1.msra.mxu0 %v53
    %88 = vmatprep.subr.mxu0 0.0
    %89 = vmatpush1.msra.mxu0 %v54
    %90 = vmatprep.subr.mxu0 0.0
    %91 = vmatpush1.msra.mxu0 %v55
    %92 = vmatprep.subr.mxu0 0.0
    %93 = vmatpush1.msra.mxu0 0.0
    %94 = vmatprep.subr.mxu0 0.0
    %95 = vmatpush1.msra.mxu0 0.0
    %96 = vmatprep.subr.mxu0 0.0
    %97 = vmatpush1.msra.mxu0 0.0
    %98 = vmatprep.subr.mxu0 0.0
    %99 = vmatpush1.msra.mxu0 0.0
    %100 = vmatprep.subr.mxu0 0.0
    %101 = vmatpush1.msra.mxu0 0.0
    %102 = vmatprep.subr.mxu0 0.0
    %103 = vmatpush1.msra.mxu0 0.0
    %104 = vmatprep.subr.mxu0 0.0
    %105 = vmatpush1.msra.mxu0 0.0
    %106 = vmatprep.subr.mxu0 0.0
    %107 = vmatpush1.msra.mxu0 0.0
    %108 = vmatprep.subr.mxu0 0.0
    %109 = vmatpush1.msra.mxu0 0.0
    %110 = vmatprep.subr.mxu0 0.0
    %111 = vmatpush1.msra.mxu0 0.0
    %112 = vmatprep.subr.mxu0 0.0
    %113 = vmatpush1.msra.mxu0 0.0
    %114 = vmatprep.subr.mxu0 0.0
    %115 = vmatpush1.msra.mxu0 0.0
    %116 = vmatprep.subr.mxu0 0.0
    %117 = vmatpush1.msra.mxu0 0.0
    %118 = vmatprep.subr.mxu0 0.0
    %119 = vmatpush1.msra.mxu0 0.0
    %120 = vmatprep.subr.mxu0 0.0
    %121 = vmatpush1.msra.mxu0 0.0
    %122 = vmatprep.subr.mxu0 0.0
    %123 = vmatpush1.msra.mxu0 0.0
    %124 = vmatprep.mubr.f32.mxu0 0.0
    %125 = vmatmul.mubr.f32.gmra.mrb[0].mxu0 %v38
    %v126 = vpop.f32.mrb[0].mxu0
    %v127 = vadd.f32 %v59, %v126
    %v128 = vpop.f32.mrb[0].mxu0
    %129 = vdwg.mxu0
    %v130 = vtanh.pop %v127
    %vm131 = vcmask 517120
    %v132 = vsel %vm131, %v130, 0.0
    %133 = vadd.xlane.f32.xlu0 %v132
    %v134 = vpop.xlane.xlu0 %133
    %v135 = vrcp.pop 64.0
    %v136 = vmul.f32 %v134, %v135
    %v137 = vsub.f32 %v130, %v136
    %v138 = vmul.f32 %v137, %v137
    %v139 = vsel %vm131, %v138, 0.0
    %140 = vadd.xlane.f32.xlu0 %v139
    %v141 = vpop.xlane.xlu0 %140
    %v142 = vmul.f32 %v141, %v135
    %v143 = vadd.f32 %v142, 1e-05
    %v144 = vrsqrt.pop %v143
    %v145 = vmul.f32 %v137, %v144
    %v146 = vld [vmem:[#allocation5 + $0x80] sm:$0xff]
    %v147 = vld [vmem:[#allocation5 + $0x88] sm:$0xff]
    %v148 = vld [vmem:[#allocation5 + $0x90] sm:$0xff]
    %v149 = vld [vmem:[#allocation5 + $0x98] sm:$0xff]
    %v150 = vld [vmem:[#allocation5 + $0xa0] sm:$0xff]
    %v151 = vld [vmem:[#allocation5 + $0xa8] sm:$0xff]
    %v152 = vld [vmem:[#allocation5 + $0xb0] sm:$0xff]
    %v153 = vld [vmem:[#allocation5 + $0xb8] sm:$0xff]
    %v154 = vlaneseq
    %v155 = vshrl.u32 %v154, 7
    %v156 = vsub.s32 1, %v155
    %v157 = vrot.slane %v39, %v156
    %vm158 = vcmask 523264
    %v160 = vsel %vm158, %v145, 0
    %162 = vmatprep.subr.mxu0 0.0
    %163 = vmatpush1.msra.mxu0 %v146
    %164 = vmatprep.subr.mxu0 0.0
    %165 = vmatpush1.msra.mxu0 %v147
    %166 = vmatprep.subr.mxu0 0.0
    %167 = vmatpush1.msra.mxu0 %v148
    %168 = vmatprep.subr.mxu0 0.0
    %169 = vmatpush1.msra.mxu0 %v149
    %170 = vmatprep.subr.mxu0 0.0
    %171 = vmatpush1.msra.mxu0 %v150
    %172 = vmatprep.subr.mxu0 0.0
    %173 = vmatpush1.msra.mxu0 %v151
    %174 = vmatprep.subr.mxu0 0.0
    %175 = vmatpush1.msra.mxu0 %v152
    %176 = vmatprep.subr.mxu0 0.0
    %177 = vmatpush1.msra.mxu0 %v153
    %178 = vmatprep.subr.mxu0 0.0
    %179 = vmatpush1.msra.mxu0 0.0
    %180 = vmatprep.subr.mxu0 0.0
    %181 = vmatpush1.msra.mxu0 0.0
    %182 = vmatprep.subr.mxu0 0.0
    %183 = vmatpush1.msra.mxu0 0.0
    %184 = vmatprep.subr.mxu0 0.0
    %185 = vmatpush1.msra.mxu0 0.0
    %186 = vmatprep.subr.mxu0 0.0
    %187 = vmatpush1.msra.mxu0 0.0
    %188 = vmatprep.subr.mxu0 0.0
    %189 = vmatpush1.msra.mxu0 0.0
    %190 = vmatprep.subr.mxu0 0.0
    %191 = vmatpush1.msra.mxu0 0.0
    %192 = vmatprep.subr.mxu0 0.0
    %193 = vmatpush1.msra.mxu0 0.0
    %194 = vmatprep.subr.mxu0 0.0
    %195 = vmatpush1.msra.mxu0 0.0
    %196 = vmatprep.subr.mxu0 0.0
    %197 = vmatpush1.msra.mxu0 0.0
    %198 = vmatprep.subr.mxu0 0.0
    %199 = vmatpush1.msra.mxu0 0.0
    %200 = vmatprep.subr.mxu0 0.0
    %201 = vmatpush1.msra.mxu0 0.0
    %202 = vmatprep.subr.mxu0 0.0
    %203 = vmatpush1.msra.mxu0 0.0
    %204 = vmatprep.subr.mxu0 0.0
    %205 = vmatpush1.msra.mxu0 0.0
    %206 = vmatprep.subr.mxu0 0.0
    %207 = vmatpush1.msra.mxu0 0.0
    %208 = vmatprep.subr.mxu0 0.0
    %209 = vmatpush1.msra.mxu0 0.0
    %210 = vmatprep.subr.mxu0 0.0
    %211 = vmatpush1.msra.mxu0 0.0
    %212 = vmatprep.subr.mxu0 0.0
    %213 = vmatpush1.msra.mxu0 0.0
    %214 = vmatprep.subr.mxu0 0.0
    %215 = vmatpush1.msra.mxu0 0.0
    %216 = vmatprep.subr.mxu0 0.0
    %217 = vmatpush1.msra.mxu0 0.0
    %218 = vmatprep.subr.mxu0 0.0
    %219 = vmatpush1.msra.mxu0 0.0
    %220 = vmatprep.subr.mxu0 0.0
    %221 = vmatpush1.msra.mxu0 0.0
    %222 = vmatprep.subr.mxu0 0.0
    %223 = vmatpush1.msra.mxu0 0.0
    %224 = vmatprep.subr.mxu0 0.0
    %225 = vmatpush1.msra.mxu0 0.0
    %226 = vmatprep.mubr.f32.mxu0 0.0
    %227 = vmatmul.mubr.f32.gmra.mrb[0].mxu0 %v160
    %v228 = vpop.f32.mrb[0].mxu0
    %v229 = vadd.f32 %v157, %v228
    %v230 = vpop.f32.mrb[0].mxu0
    %231 = vdwg.mxu0
    %v232 = vmax.f32 %v229, 0.0
    %v233 = vld [vmem:[#allocation5 + $0xc0] sm:$0xff]
    %v234 = vld [vmem:[#allocation5 + $0xc8] sm:$0xff]
    %v235 = vlaneseq
    %v236 = vshrl.u32 %v235, 7
    %v237 = vsub.s32 2, %v236
    %v238 = vrot.slane %v39, %v237
    %vm239 = vcmask 130048
    %v241 = vsel %vm239, %v232, 0
    %243 = vmatprep.subr.mxu0 0.0
    %244 = vmatpush1.msra.mxu0 %v233
    %245 = vmatprep.subr.mxu0 0.0
    %246 = vmatpush1.msra.mxu0 %v234
    %247 = vmatprep.subr.mxu0 0.0
    %248 = vmatpush1.msra.mxu0 0.0
    %249 = vmatprep.subr.mxu0 0.0
    %250 = vmatpush1.msra.mxu0 0.0
    %251 = vmatprep.subr.mxu0 0.0
    %252 = vmatpush1.msra.mxu0 0.0
    %253 = vmatprep.subr.mxu0 0.0
    %254 = vmatpush1.msra.mxu0 0.0
    %255 = vmatprep.subr.mxu0 0.0
    %256 = vmatpush1.msra.mxu0 0.0
    %257 = vmatprep.subr.mxu0 0.0
    %258 = vmatpush1.msra.mxu0 0.0
    %259 = vmatprep.subr.mxu0 0.0
    %260 = vmatpush1.msra.mxu0 0.0
    %261 = vmatprep.subr.mxu0 0.0
    %262 = vmatpush1.msra.mxu0 0.0
    %263 = vmatprep.subr.mxu0 0.0
    %264 = vmatpush1.msra.mxu0 0.0
    %265 = vmatprep.subr.mxu0 0.0
    %266 = vmatpush1.msra.mxu0 0.0
    %267 = vmatprep.subr.mxu0 0.0
    %268 = vmatpush1.msra.mxu0 0.0
    %269 = vmatprep.subr.mxu0 0.0
    %270 = vmatpush1.msra.mxu0 0.0
    %271 = vmatprep.subr.mxu0 0.0
    %272 = vmatpush1.msra.mxu0 0.0
    %273 = vmatprep.subr.mxu0 0.0
    %274 = vmatpush1.msra.mxu0 0.0
    %275 = vmatprep.subr.mxu0 0.0
    %276 = vmatpush1.msra.mxu0 0.0
    %277 = vmatprep.subr.mxu0 0.0
    %278 = vmatpush1.msra.mxu0 0.0
    %279 = vmatprep.subr.mxu0 0.0
    %280 = vmatpush1.msra.mxu0 0.0
    %281 = vmatprep.subr.mxu0 0.0
    %282 = vmatpush1.msra.mxu0 0.0
    %283 = vmatprep.subr.mxu0 0.0
    %284 = vmatpush1.msra.mxu0 0.0
    %285 = vmatprep.subr.mxu0 0.0
    %286 = vmatpush1.msra.mxu0 0.0
    %287 = vmatprep.subr.mxu0 0.0
    %288 = vmatpush1.msra.mxu0 0.0
    %289 = vmatprep.subr.mxu0 0.0
    %290 = vmatpush1.msra.mxu0 0.0
    %291 = vmatprep.subr.mxu0 0.0
    %292 = vmatpush1.msra.mxu0 0.0
    %293 = vmatprep.subr.mxu0 0.0
    %294 = vmatpush1.msra.mxu0 0.0
    %295 = vmatprep.subr.mxu0 0.0
    %296 = vmatpush1.msra.mxu0 0.0
    %297 = vmatprep.subr.mxu0 0.0
    %298 = vmatpush1.msra.mxu0 0.0
    %299 = vmatprep.subr.mxu0 0.0
    %300 = vmatpush1.msra.mxu0 0.0
    %301 = vmatprep.subr.mxu0 0.0
    %302 = vmatpush1.msra.mxu0 0.0
    %303 = vmatprep.subr.mxu0 0.0
    %304 = vmatpush1.msra.mxu0 0.0
    %305 = vmatprep.subr.mxu0 0.0
    %306 = vmatpush1.msra.mxu0 0.0
    %307 = vmatprep.mubr.f32.mxu0 0.0
    %308 = vmatmul.mubr.f32.gmra.mrb[0].mxu0 %v241
    %v309 = vpop.f32.mrb[0].mxu0
    %v310 = vadd.f32 %v238, %v309
    %v311 = vpop.f32.mrb[0].mxu0
    %312 = vdwg.mxu0
    %vm313 = vcmask 25600
    %314 = vst.msk [vmem:[#allocation7] sm:$0x3] %vm313, %v310
    // Predicated region
    $region18: #{tpu_custom_call.1} parent=1 // pred_check
      _
    $region19: #{tpu_custom_call.1} parent=1 // pred_check_branch
      %316 = sbr.rel (0) target = $region21
    $region20: #{tpu_custom_call.1} parent=1 // pred_region
      %s318 = ssub.s32 32, 32
      %319 = vsyncadd [#allocation4], %s318
      %s321 = sshll.u32 [#allocation7], 4
      %s322 = int_to_ptr.vmem [resolvable:$true] %s321
      %324 = dma.vmem_to_hbm [thread:$0]  %s322, 32, %s2, [#allocation4]
    $region21: #{tpu_custom_call.1} parent=1 // pred_fallthru
      _
    // Predicated region
    $region22: #{tpu_custom_call.1} parent=1 // pred_check
      _
    $region23: #{tpu_custom_call.1} parent=1 // pred_check_branch
      %326 = sbr.rel (0) target = $region25
    $region24: #{tpu_custom_call.1} parent=1 // pred_region
      %327 = dma.done [#allocation4], 32
    $region25: #{tpu_custom_call.1} parent=1 // pred_fallthru
      _
    %328 = vsyncpa [#allocation3], 1
    %329 = vsyncpa [#allocation6], 1
    %330 = vsyncpa [#allocation4], 1

</llo_original>
